<compile_context>
chip_gen: v7x
topology: tpu7x:2x2x1
jax: 0.10.0
libtpu: 0.0.40
codegen_flags: <defaults>
</compile_context>

<pallas_src>
import jax
import jax.numpy as jnp
from jax.experimental import pallas as pl
from jax.experimental.pallas import tpu as pltpu

BN_EPS = 1e-5


# ---------------------------------------------------------------------------
# VMEM budgeting (generation-aware).
# ---------------------------------------------------------------------------
def _vmem_budgets():
    """(tile working-set budget, scoped-VMEM limit) in bytes, per generation."""
    try:
        cap = int(pltpu.get_tpu_info().vmem_capacity_bytes)
    except Exception:  # pragma: no cover - conservative fallback (v7x per-TC size)
        cap = 64 << 20
    tile_budget = min(int(cap * 0.70), 56 << 20)   # ~45 MiB on v7x, 56 MiB on v5e/v6e
    vmem_limit = min(int(cap * 0.85), 96 << 20)    # leave headroom for compiler scratch
    return tile_budget, vmem_limit


# ---------------------------------------------------------------------------
# Pass 1: mean-pool over sequence + linear layer (batch-tiled, parallel grid).
# ---------------------------------------------------------------------------
def _pool_fc_kernel(h_ref, w_ref, y_ref):
    # h_ref: [Bt, S, H] native dtype   w_ref: [H, F] bf16 (pre-scaled by 1/S)
    # y_ref: [Bt, F] f32
    pooled = jnp.sum(h_ref[...], axis=1, dtype=jnp.float32)      # no f32 temp of the tile
    y_ref[...] = jnp.dot(
        pooled.astype(jnp.bfloat16), w_ref[...],
        preferred_element_type=jnp.float32,
    )


# ---------------------------------------------------------------------------
# Fused variant for small batches (grid_b == 1): pool + fc + BatchNorm.
# ---------------------------------------------------------------------------
def _pool_fc_bn_kernel(h_ref, w_ref, gamma_ref, beta_ref, o_ref):
    pooled = jnp.sum(h_ref[...], axis=1, dtype=jnp.float32)
    y = jnp.dot(pooled.astype(jnp.bfloat16), w_ref[...],
                preferred_element_type=jnp.float32)
    mu = jnp.mean(y, axis=0, keepdims=True)
    diff = y - mu
    var = jnp.mean(diff * diff, axis=0, keepdims=True)            # biased variance
    scale = jax.lax.rsqrt(var + BN_EPS) * gamma_ref[...]          # [1, F] only
    o_ref[...] = diff * scale + beta_ref[...]


# ---------------------------------------------------------------------------
# Pass 2: BatchNorm1d, training mode (full-batch statistics), feature-tiled.
# ---------------------------------------------------------------------------
def _bn_kernel(y_ref, gamma_ref, beta_ref, o_ref):
    # y_ref: [B, Ft] f32   gamma/beta: [1, Ft] f32   o_ref: [B, Ft] f32
    y = y_ref[...]
    mu = jnp.mean(y, axis=0, keepdims=True)
    diff = y - mu
    var = jnp.mean(diff * diff, axis=0, keepdims=True)
    scale = jax.lax.rsqrt(var + BN_EPS) * gamma_ref[...]          # one [B,Ft] multiply total
    o_ref[...] = diff * scale + beta_ref[...]


# ---------------------------------------------------------------------------
# Tile pickers.
# ---------------------------------------------------------------------------
def _pick_batch_tile(B, S, H, F, budget_bytes, h_bytes):
    """Largest MXU-aligned batch tile fitting VMEM, with >=2 grid steps when B is big."""
    if B <= 16:
        return B                       # tiny batch: single tile, BN fused into pass 1

    def need(t):
        # 2x double-buffered hidden tile (native dtype) + resident W (constant index_map,
        # charged once) + 2x double-buffered f32 output tile.
        return 2 * t * S * H * h_bytes + H * F * 2 + 2 * t * F * 4

    align = 256 if B >= 512 else 128 if B >= 256 else 8
    tile = max(align, ((B // 2) // align) * align)   # >=2 steps -> both v7x TCs busy
    tile = min(tile, 2048)
    while tile > align and need(tile) > budget_bytes:
        tile = max(align, ((tile // 2) // align) * align)
    return tile


def _pick_feat_tile(B, F, budget_bytes):
    if F % 128 != 0:
        return F
    tile = F // 2 if (F % 256 == 0 and F >= 256) else F           # >=2 steps when possible
    # 2x double-buffered f32 input + output [B, tile] blocks.
    while tile > 128 and tile % 256 == 0 and 16 * B * tile > budget_bytes:
        tile //= 2
    return tile


# ---------------------------------------------------------------------------
# Wrapper.
# ---------------------------------------------------------------------------
def paraphrase_head(hidden_states, fc_w, fc_b, bn_gamma, bn_beta,
                    *, batch_tile=None, feat_tile=None):
    """hidden_states: [B, S, H]; fc_w: [H, F]; fc_b/bn_gamma/bn_beta: [1, F] -> [B, F] f32."""
    del fc_b  # cancelled exactly by the following training-mode BatchNorm (and init'd to 0)

    B, S, H = hidden_states.shape
    F = fc_w.shape[1]

    # Stream the encoder output in its native dtype (no extra HBM pass for a cast).
    # Fold the 1/S mean-pool scale into the tiny weight once, outside the hot loop;
    # bf16 x bf16 -> f32 is the MXU fast path (matches TPU default f32-dot semantics).
    w = (fc_w.astype(jnp.float32) * (1.0 / S)).astype(jnp.bfloat16)
    gamma = bn_gamma.astype(jnp.float32)
    beta = bn_beta.astype(jnp.float32)
    h_bytes = hidden_states.dtype.itemsize

    tile_budget, vmem_limit = _vmem_budgets()
    if batch_tile is None:
        batch_tile = _pick_batch_tile(B, S, H, F, tile_budget, h_bytes)
    grid_b = pl.cdiv(B, batch_tile)

    cparams = pltpu.CompilerParams(
        dimension_semantics=("parallel",),
        vmem_limit_bytes=vmem_limit,
    )

    if grid_b == 1:
        # Small batch: fuse BN into pass 1 -- no y HBM round trip, one launch.
        return pl.pallas_call(
            _pool_fc_bn_kernel,
            out_shape=jax.ShapeDtypeStruct((B, F), jnp.float32),
            grid_spec=pltpu.PrefetchScalarGridSpec(
                num_scalar_prefetch=0,
                grid=(1,),
                in_specs=[
                    pl.BlockSpec((B, S, H), lambda i: (0, 0, 0)),
                    pl.BlockSpec((H, F), lambda i: (0, 0)),
                    pl.BlockSpec((1, F), lambda i: (0, 0)),
                    pl.BlockSpec((1, F), lambda i: (0, 0)),
                ],
                out_specs=pl.BlockSpec((B, F), lambda i: (0, 0)),
            ),
            compiler_params=cparams,
        )(hidden_states, w, gamma, beta)

    # -------- Pass 1: pooled @ W, batch-tiled + double-buffered --------
    y = pl.pallas_call(
        _pool_fc_kernel,
        out_shape=jax.ShapeDtypeStruct((B, F), jnp.float32),
        grid_spec=pltpu.PrefetchScalarGridSpec(
            num_scalar_prefetch=0,
            grid=(grid_b,),
            in_specs=[
                pl.BlockSpec((batch_tile, S, H), lambda i: (i, 0, 0)),
                pl.BlockSpec((H, F), lambda i: (0, 0)),   # W stays resident across steps
            ],
            out_specs=pl.BlockSpec((batch_tile, F), lambda i: (i, 0)),
        ),
        compiler_params=cparams,
    )(hidden_states, w)

    # -------- Pass 2: BatchNorm over the full batch, feature-tiled --------
    if feat_tile is None:
        feat_tile = _pick_feat_tile(B, F, tile_budget)
    grid_f = pl.cdiv(F, feat_tile)

    out = pl.pallas_call(
        _bn_kernel,
        out_shape=jax.ShapeDtypeStruct((B, F), jnp.float32),
        grid_spec=pltpu.PrefetchScalarGridSpec(
            num_scalar_prefetch=0,
            grid=(grid_f,),
            in_specs=[
                pl.BlockSpec((B, feat_tile), lambda j: (0, j)),
                pl.BlockSpec((1, feat_tile), lambda j: (0, j)),
                pl.BlockSpec((1, feat_tile), lambda j: (0, j)),
            ],
            out_specs=pl.BlockSpec((B, feat_tile), lambda j: (0, j)),
        ),
        compiler_params=cparams,
    )(y, gamma, beta)

    return out


def reference_head(hidden_states, fc_w, fc_b, bn_gamma, bn_beta):
    """Pure-JAX reference mirroring the torch forward with the kernel's numerics
    (f32 pooled sum, bf16 GEMM operands, f32 accumulation)."""
    S = hidden_states.shape[1]
    pooled = jnp.sum(hidden_states.astype(jnp.float32), axis=1)
    w = (fc_w.astype(jnp.float32) * (1.0 / S)).astype(jnp.bfloat16)
    y = jnp.dot(pooled.astype(jnp.bfloat16), w,
                preferred_element_type=jnp.float32) + fc_b
    mu = jnp.mean(y, axis=0, keepdims=True)
    var = jnp.mean((y - mu) ** 2, axis=0, keepdims=True)
    return (y - mu) / jnp.sqrt(var + BN_EPS) * bn_gamma + bn_beta


if __name__ == "__main__":
    # Shapes implied by the module: batch=2, seq=16 (tokenizer max_length=16),
    # small stand-ins for T5 hidden_size (32) and fc_dim (128).
    B, S, H, F = 2, 16, 32, 128

    key = jax.random.PRNGKey(0)
    k_h, k_w = jax.random.split(key)

    # Synthetic T5 encoder output (deterministic).
    hidden_states = jax.random.normal(k_h, (B, S, H), dtype=jnp.float32)

    # fc: xavier_normal_ on weight [F, H]; stored transposed as [H, F]; bias = 0.
    xavier_std = (2.0 / (H + F)) ** 0.5
    fc_w = (jax.random.normal(k_w, (F, H), dtype=jnp.float32) * xavier_std).T
    fc_b = jnp.zeros((1, F), dtype=jnp.float32)

    # bn: weight = 1, bias = 0 (nn.init.constant_).
    bn_gamma = jnp.ones((1, F), dtype=jnp.float32)
    bn_beta = jnp.zeros((1, F), dtype=jnp.float32)

    out = paraphrase_head(hidden_states, fc_w, fc_b, bn_gamma, bn_beta)
    out = jax.block_until_ready(out)

    ref = reference_head(hidden_states, fc_w, fc_b, bn_gamma, bn_beta)
    assert out.shape == (B, F)
    assert jnp.allclose(out, ref, atol=1e-3, rtol=1e-3), float(jnp.max(jnp.abs(out - ref)))

    print("KERNEL_OK")
</pallas_src>

<mosaic_0001>
module attributes {stable_mosaic.version = 11 : i64} {
  func.func @_pool_fc_bn_kernel(%arg0: i32, %arg1: memref<2x16x32xf32, #tpu.memory_space<vmem>>, %arg2: memref<32x128xbf16, #tpu.memory_space<vmem>>, %arg3: memref<1x128xf32, #tpu.memory_space<vmem>>, %arg4: memref<1x128xf32, #tpu.memory_space<vmem>>, %arg5: memref<2x128xf32, #tpu.memory_space<vmem>>) attributes {dimension_semantics = [#tpu.dimension_semantics<parallel>], iteration_bounds = array<i64: 1>, scalar_prefetch = 0 : i64, scratch_operands = 0 : i64, tpu.core_type = #tpu.core_type<tc>, window_params = [{pipeline_mode = #tpu.pipeline_mode<synchronous>, transform_indices = @transform_0, window_bounds = array<i64: 2, 16, 32>}, {pipeline_mode = #tpu.pipeline_mode<synchronous>, transform_indices = @transform_1, window_bounds = array<i64: 32, 128>}, {pipeline_mode = #tpu.pipeline_mode<synchronous>, transform_indices = @transform_2, window_bounds = array<i64: 1, 128>}, {pipeline_mode = #tpu.pipeline_mode<synchronous>, transform_indices = @transform_3, window_bounds = array<i64: 1, 128>}, {pipeline_mode = #tpu.pipeline_mode<synchronous>, transform_indices = @transform_4, window_bounds = array<i64: 2, 128>}]} {
    %c0 = arith.constant 0 : index
    %c0_0 = arith.constant 0 : index
    %c0_1 = arith.constant 0 : index
    %0 = vector.load %arg1[%c0, %c0_0, %c0_1] : memref<2x16x32xf32, #tpu.memory_space<vmem>>, vector<2x16x32xf32>
    %cst = arith.constant dense<0.000000e+00> : vector<2x32xf32>
    %1 = vector.multi_reduction <add>, %0, %cst [1] : vector<2x16x32xf32> to vector<2x32xf32>
    %2 = arith.truncf %1 : vector<2x32xf32> to vector<2x32xbf16>
    %c0_2 = arith.constant 0 : index
    %c0_3 = arith.constant 0 : index
    %3 = vector.load %arg2[%c0_2, %c0_3] : memref<32x128xbf16, #tpu.memory_space<vmem>>, vector<32x128xbf16>
    %cst_4 = arith.constant dense<0.000000e+00> : vector<2x128xf32>
    %4 = tpu.matmul %2, %3, %cst_4 {dimension_numbers = #tpu.dot_dimension_numbers<[1], [0], [0], [1], [0, 0, 1, 1], [], []>} : vector<2x32xbf16>, vector<32x128xbf16>, vector<2x128xf32> -> vector<2x128xf32>
    %cst_5 = arith.constant dense<0.000000e+00> : vector<128xf32>
    %5 = vector.multi_reduction <add>, %4, %cst_5 [0] : vector<2x128xf32> to vector<128xf32>
    %6 = vector.shape_cast %5 : vector<128xf32> to vector<1x128xf32>
    %cst_6 = arith.constant 2.000000e+00 : f32
    %7 = vector.broadcast %cst_6 : f32 to vector<1x128xf32>
    %8 = arith.divf %6, %7 : vector<1x128xf32>
    %9 = vector.broadcast %8 : vector<1x128xf32> to vector<2x128xf32>
    %10 = arith.subf %4, %9 : vector<2x128xf32>
    %11 = arith.mulf %10, %10 : vector<2x128xf32>
    %cst_7 = arith.constant dense<0.000000e+00> : vector<128xf32>
    %12 = vector.multi_reduction <add>, %11, %cst_7 [0] : vector<2x128xf32> to vector<128xf32>
    %13 = vector.shape_cast %12 : vector<128xf32> to vector<1x128xf32>
    %cst_8 = arith.constant 2.000000e+00 : f32
    %14 = vector.broadcast %cst_8 : f32 to vector<1x128xf32>
    %15 = arith.divf %13, %14 : vector<1x128xf32>
    %cst_9 = arith.constant 9.99999974E-6 : f32
    %16 = vector.broadcast %cst_9 : f32 to vector<1x128xf32>
    %17 = arith.addf %15, %16 : vector<1x128xf32>
    %18 = math.rsqrt %17 : vector<1x128xf32>
    %c0_10 = arith.constant 0 : index
    %c0_11 = arith.constant 0 : index
    %19 = vector.load %arg3[%c0_10, %c0_11] : memref<1x128xf32, #tpu.memory_space<vmem>>, vector<1x128xf32>
    %20 = arith.mulf %18, %19 : vector<1x128xf32>
    %21 = vector.broadcast %20 : vector<1x128xf32> to vector<2x128xf32>
    %22 = arith.mulf %10, %21 : vector<2x128xf32>
    %c0_12 = arith.constant 0 : index
    %c0_13 = arith.constant 0 : index
    %23 = vector.load %arg4[%c0_12, %c0_13] : memref<1x128xf32, #tpu.memory_space<vmem>>, vector<1x128xf32>
    %24 = vector.broadcast %23 : vector<1x128xf32> to vector<2x128xf32>
    %25 = arith.addf %22, %24 : vector<2x128xf32>
    %c0_14 = arith.constant 0 : index
    %c0_15 = arith.constant 0 : index
    %26 = vector.load %arg5[%c0_14, %c0_15] : memref<2x128xf32, #tpu.memory_space<vmem>>, vector<2x128xf32>
    tpu.vector_store %arg5[%c0_14, %c0_15], %25 {strides = array<i32>} : memref<2x128xf32, #tpu.memory_space<vmem>>, vector<2x128xf32>,
    return
  }
  func.func @transform_0(%arg0: i32) -> (i32, i32, i32) {
    %c0_i32 = arith.constant 0 : i32
    %c0_i32_0 = arith.constant 0 : i32
    %c0_i32_1 = arith.constant 0 : i32
    %c0_i32_2 = arith.constant 0 : i32
    return %c0_i32, %c0_i32_0, %c0_i32_1 : i32, i32, i32
  }
  func.func @transform_1(%arg0: i32) -> (i32, i32) {
    %c0_i32 = arith.constant 0 : i32
    %c0_i32_0 = arith.constant 0 : i32
    %c0_i32_1 = arith.constant 0 : i32
    return %c0_i32, %c0_i32_0 : i32, i32
  }
  func.func @transform_2(%arg0: i32) -> (i32, i32) {
    %c0_i32 = arith.constant 0 : i32
    %c0_i32_0 = arith.constant 0 : i32
    %c0_i32_1 = arith.constant 0 : i32
    return %c0_i32, %c0_i32_0 : i32, i32
  }
  func.func @transform_3(%arg0: i32) -> (i32, i32) {
    %c0_i32 = arith.constant 0 : i32
    %c0_i32_0 = arith.constant 0 : i32
    %c0_i32_1 = arith.constant 0 : i32
    return %c0_i32, %c0_i32_0 : i32, i32
  }
  func.func @transform_4(%arg0: i32) -> (i32, i32) {
    %c0_i32 = arith.constant 0 : i32
    %c0_i32_0 = arith.constant 0 : i32
    %c0_i32_1 = arith.constant 0 : i32
    return %c0_i32, %c0_i32_0 : i32, i32
  }
}

</mosaic_0001>

<llo_original>
// kernel: tpu_custom_call.1
$region0: #{tpu_custom_call.1}
  #allocation0 [shape = 'u32[]', space=smem, size = 0x4, offset = 0x4, fixed_abs, tag = 'smem constant byte address 0x4 - core index']
  #allocation1 [shape = 'u32[144,128]{1,0:T(1,128)}', space=vmem, size = 0x12000, scoped, tag = 'internal scratch']
  %s0 = inlined_call_operand.hbm [shape: f32[2,16,32], index: 0, kind: input, shape index: {}]
  %s1 = inlined_call_operand.hbm [shape: bf16[32,128], index: 1, kind: input, shape index: {}]
  %s2 = inlined_call_operand.vmem [shape: f32[1,128], index: 2, kind: input, shape index: {}]
  %s3 = inlined_call_operand.vmem [shape: f32[1,128], index: 3, kind: input, shape index: {}]
  %s4 = inlined_call_operand.hbm [shape: f32[2,128], index: 4, kind: output, shape index: {}]
  %s5 = sld [smem:[#allocation0]]
  $region34: #{tpu_custom_call.1} parent=0
    _
  %s7 = ssub.s32 1, %s5
  %s8 = scalar_select 0, %s7, %s5
  $region1: #{tpu_custom_call.1} parent=0
    #allocation2 [shape = 'u8[16384]{0}', space=vmem, size = 0x4000, scoped, tag = 'input window, operand 0, single buffered']
    #allocation3 [shape = 's32[1]{0}', space=sflag, size = 0x4, scoped, tag = 'scoped memory for tpu_custom_call.1']
    #allocation4 [shape = 's32[1]{0}', space=sflag, size = 0x4, scoped, tag = 'scoped memory for tpu_custom_call.1']
    #allocation5 [shape = 'u8[8192]{0}', space=vmem, size = 0x2000, scoped, tag = 'input window, operand 1, single buffered']
    #allocation6 [shape = 's32[1]{0}', space=sflag, size = 0x4, scoped, tag = 'scoped memory for tpu_custom_call.1']
    #allocation7 [shape = 'u8[1024]{0}', space=vmem, size = 0x400, scoped, tag = 'output window, operand 0, single buffered']
    %9 = vsyncpa [#allocation3], 0
    %10 = vsyncpa [#allocation6], 0
    %11 = vsyncpa [#allocation4], 0
    // Predicated region
    $region2: #{tpu_custom_call.1} parent=1 // pred_check
      _
    $region3: #{tpu_custom_call.1} parent=1 // pred_check_branch
      %13 = sbr.rel (0) target = $region5
    $region4: #{tpu_custom_call.1} parent=1 // pred_region
      %s15 = ssub.s32 512, 512
      %16 = vsyncadd [#allocation3], %s15
      %s17 = sshll.u32 [#allocation2], 4
      %s18 = int_to_ptr.vmem [resolvable:$true] %s17
      %23 = dma.hbm_to_vmem [thread:$0]  %s0, 512, %s18, [#allocation3], 128, 128, 8
    $region5: #{tpu_custom_call.1} parent=1 // pred_fallthru
      _
    // Predicated region
    $region6: #{tpu_custom_call.1} parent=1 // pred_check
      _
    $region7: #{tpu_custom_call.1} parent=1 // pred_check_branch
      %25 = sbr.rel (0) target = $region9
    $region8: #{tpu_custom_call.1} parent=1 // pred_region
      %s27 = ssub.s32 256, 256
      %28 = vsyncadd [#allocation6], %s27
      %s29 = sshll.u32 [#allocation5], 4
      %s30 = int_to_ptr.vmem [resolvable:$true] %s29
      %35 = dma.hbm_to_vmem [thread:$0]  %s1, 256, %s30, [#allocation6], 64, 64, 4
    $region9: #{tpu_custom_call.1} parent=1 // pred_fallthru
      _
    // Predicated region
    $region10: #{tpu_custom_call.1} parent=1 // pred_check
      _
    $region11: #{tpu_custom_call.1} parent=1 // pred_check_branch
      %37 = sbr.rel (0) target = $region13
    $region12: #{tpu_custom_call.1} parent=1 // pred_region
      _
    $region13: #{tpu_custom_call.1} parent=1 // pred_fallthru
      _
    // Predicated region
    $region14: #{tpu_custom_call.1} parent=1 // pred_check
      _
    $region15: #{tpu_custom_call.1} parent=1 // pred_check_branch
      %39 = sbr.rel (0) target = $region17
    $region16: #{tpu_custom_call.1} parent=1 // pred_region
      _
    $region17: #{tpu_custom_call.1} parent=1 // pred_fallthru
      _
    // Predicated region
    $region18: #{tpu_custom_call.1} parent=1 // pred_check
      _
    $region19: #{tpu_custom_call.1} parent=1 // pred_check_branch
      %41 = sbr.rel (0) target = $region21
    $region20: #{tpu_custom_call.1} parent=1 // pred_region
      %42 = dma.done [#allocation3], 512
    $region21: #{tpu_custom_call.1} parent=1 // pred_fallthru
      _
    // Predicated region
    $region22: #{tpu_custom_call.1} parent=1 // pred_check
      _
    $region23: #{tpu_custom_call.1} parent=1 // pred_check_branch
      %44 = sbr.rel (0) target = $region25
    $region24: #{tpu_custom_call.1} parent=1 // pred_region
      %45 = dma.done [#allocation6], 256
    $region25: #{tpu_custom_call.1} parent=1 // pred_fallthru
      _
    %v47 = vld [vmem:[#allocation2] sm:$0xff]
    %v48 = vld [vmem:[#allocation2 + $0x8] sm:$0xff]
    %v49 = vld [vmem:[#allocation2 + $0x10] sm:$0xff]
    %v50 = vld [vmem:[#allocation2 + $0x18] sm:$0xff]
    %vm51 = vcmask 261120
    %v52 = vsel %vm51, %v47, 0.0
    %v53 = vsel %vm51, %v48, 0.0
    %v54 = vadd.f32 %v52, %v53
    %v55 = vrot.slane %v54, 4
    %v56 = vadd.f32 %v54, %v55
    %v57 = vrot.slane %v56, 2
    %v58 = vadd.f32 %v56, %v57
    %v59 = vrot.slane %v58, 1
    %v60 = vadd.f32 %v58, %v59
    %v61 = vsel %vm51, %v49, 0.0
    %v62 = vsel %vm51, %v50, 0.0
    %v63 = vadd.f32 %v61, %v62
    %v64 = vrot.slane %v63, 4
    %v65 = vadd.f32 %v63, %v64
    %v66 = vrot.slane %v65, 2
    %v67 = vadd.f32 %v65, %v66
    %v68 = vrot.slane %v67, 1
    %v69 = vadd.f32 %v67, %v68
    %v70 = vpack.c.bf16 %v60, %v60
    %v71 = vpack.c.bf16 %v69, %v69
    %v72 = vld [vmem:[#allocation5] sm:$0xf]
    %v73 = vld [vmem:[#allocation5 + $0x4] sm:$0xf]
    %v74 = vld [vmem:[#allocation5 + $0x8] sm:$0xf]
    %v75 = vld [vmem:[#allocation5 + $0xc] sm:$0xf]
    %v78 = vunpack.c.l.b16 %v70
    %v79 = vunpack.c.l.b16 %v71
    %vm80 = vcmask 1041409
    %v81 = vsel %vm80, %v79, %v78
    %v82 = vpack.c.b16 %v81, %v81
    %v87 = vunpack.c.l.b16 %v72
    %v88 = vunpack.c.l.b16 %v73
    %v89 = vunpack.c.l.b16 %v74
    %v90 = vunpack.c.l.b16 %v75
    %v91 = vpack.c.b16 %v88, %v87
    %v92 = vpack.c.b16 %v90, %v89
    %v96 = vsel %vm51, %v82, 0
    %98 = vmatprep.subr.bf16.mxu0 0
    %99 = vmatpush1.bf16.msra.mxu0 %v91
    %100 = vmatprep.subr.bf16.mxu0 0
    %101 = vmatpush1.bf16.msra.mxu0 %v92
    %102 = vmatprep.subr.bf16.mxu0 0
    %103 = vmatpush1.bf16.msra.mxu0 0
    %104 = vmatprep.subr.bf16.mxu0 0
    %105 = vmatpush1.bf16.msra.mxu0 0
    %106 = vmatprep.subr.bf16.mxu0 0
    %107 = vmatpush1.bf16.msra.mxu0 0
    %108 = vmatprep.subr.bf16.mxu0 0
    %109 = vmatpush1.bf16.msra.mxu0 0
    %110 = vmatprep.subr.bf16.mxu0 0
    %111 = vmatpush1.bf16.msra.mxu0 0
    %112 = vmatprep.subr.bf16.mxu0 0
    %113 = vmatpush1.bf16.msra.mxu0 0
    %114 = vmatprep.subr.bf16.mxu0 0
    %115 = vmatpush1.bf16.msra.mxu0 0
    %116 = vmatprep.subr.bf16.mxu0 0
    %117 = vmatpush1.bf16.msra.mxu0 0
    %118 = vmatprep.subr.bf16.mxu0 0
    %119 = vmatpush1.bf16.msra.mxu0 0
    %120 = vmatprep.subr.bf16.mxu0 0
    %121 = vmatpush1.bf16.msra.mxu0 0
    %122 = vmatprep.subr.bf16.mxu0 0
    %123 = vmatpush1.bf16.msra.mxu0 0
    %124 = vmatprep.subr.bf16.mxu0 0
    %125 = vmatpush1.bf16.msra.mxu0 0
    %126 = vmatprep.subr.bf16.mxu0 0
    %127 = vmatpush1.bf16.msra.mxu0 0
    %128 = vmatprep.subr.bf16.mxu0 0
    %129 = vmatpush1.bf16.msra.mxu0 0
    %130 = vmatprep.mubr.bf16.mxu0 0
    %131 = vmatmul.mubr.bf16.gmra.mrb[0].mxu0 %v96
    %v132 = vpop.f32.mrb[0].mxu0
    %v133 = vadd.f32 0.0, %v132
    %v134 = vpop.f32.mrb[0].mxu0
    %v135 = vpop.f32.mrb[0].mxu0
    %v136 = vpop.f32.mrb[0].mxu0
    %137 = vdwg.mxu0
    %vm138 = vcmask 1041408
    %v139 = vsel %vm138, %v133, 0.0
    %v140 = vrot.slane %v139, 4
    %v141 = vadd.f32 %v139, %v140
    %v142 = vrot.slane %v141, 2
    %v143 = vadd.f32 %v141, %v142
    %v144 = vrot.slane %v143, 1
    %v145 = vadd.f32 %v143, %v144
    %v146 = vrcp.pop 2.0
    %v147 = vmul.f32 %v145, %v146
    %v148 = vsub.f32 %v133, %v147
    %v149 = vmul.f32 %v148, %v148
    %v150 = vsel %vm138, %v149, 0.0
    %v151 = vrot.slane %v150, 4
    %v152 = vadd.f32 %v150, %v151
    %v153 = vrot.slane %v152, 2
    %v154 = vadd.f32 %v152, %v153
    %v155 = vrot.slane %v154, 1
    %v156 = vadd.f32 %v154, %v155
    %v157 = vmul.f32 %v156, %v146
    %v158 = vadd.f32 %v157, 1e-05
    %v159 = vrsqrt.pop %v158
    %v160 = vld [vmem:[%s2] sm:$0x1]
    %v161 = vmul.f32 %v159, %v160
    %v162 = vlaneseq
    %v163 = vshrl.u32 %v162, 7
    %v164 = vsub.s32 0, %v163
    %v165 = vrot.slane %v161, %v164
    %v166 = vmul.f32 %v148, %v165
    %v167 = vld [vmem:[%s3] sm:$0x1]
    %v169 = vlaneseq
    %v170 = vshrl.u32 %v169, 7
    %v171 = vsub.s32 0, %v170
    %v172 = vrot.slane %v167, %v171
    %v174 = vadd.f32 %v166, %v172
    %175 = vst [vmem:[#allocation7] sm:$0x3] %v174
    // Predicated region
    $region26: #{tpu_custom_call.1} parent=1 // pred_check
      _
    $region27: #{tpu_custom_call.1} parent=1 // pred_check_branch
      %177 = sbr.rel (0) target = $region29
    $region28: #{tpu_custom_call.1} parent=1 // pred_region
      %s179 = ssub.s32 32, 32
      %180 = vsyncadd [#allocation4], %s179
      %s182 = sshll.u32 [#allocation7], 4
      %s183 = int_to_ptr.vmem [resolvable:$true] %s182
      %185 = dma.vmem_to_hbm [thread:$0]  %s183, 32, %s4, [#allocation4]
    $region29: #{tpu_custom_call.1} parent=1 // pred_fallthru
      _
    // Predicated region
    $region30: #{tpu_custom_call.1} parent=1 // pred_check
      _
    $region31: #{tpu_custom_call.1} parent=1 // pred_check_branch
      %187 = sbr.rel (0) target = $region33
    $region32: #{tpu_custom_call.1} parent=1 // pred_region
      %188 = dma.done [#allocation4], 32
    $region33: #{tpu_custom_call.1} parent=1 // pred_fallthru
      _
    %189 = vsyncpa [#allocation3], 1
    %190 = vsyncpa [#allocation6], 1
    %191 = vsyncpa [#allocation4], 1

</llo_original>
